<compile_context>
chip_gen: v7x
topology: tpu7x:2x2x1
jax: 0.10.0
libtpu: 0.0.40
codegen_flags: <defaults>
</compile_context>

<pallas_src>
import functools

import jax
import jax.numpy as jnp
from jax.experimental import pallas as pl
from jax.experimental.pallas import tpu as pltpu

EPS = 1e-5  # nn.BatchNorm2d default eps

_TARGET_TILE_BYTES = 4 * 1024 * 1024    # ~4 MiB per pipeline buffer
_VMEM_LIMIT_BYTES = 40 * 1024 * 1024    # safe on v5e/v6e (128 MiB) and v7x (64 MiB)
_FUSED_MAX_F32_BYTES = 4 * 1024 * 1024  # fused single-kernel path when x (as f32) is this small


def _cdiv(a, b):
    return -(-a // b)


def _round_down(a, mult):
    return (a // mult) * mult


def _pick_tiles(r, m, itemsize):
    """Pick (rt, mt) for a (R, M) = (N*C, H*W) view.

    rt is a multiple of 8 (or the full row count when R < 8); mt is a multiple
    of 128 or the full spatial extent.  Tile bytes stay <= ~4 MiB so the
    double-buffered pipeline (2 in + 2 out buffers in pass 2) fits comfortably
    under the scoped-VMEM limit on every TPU generation.  Full-M tiles are
    preferred (each row is one fully contiguous HBM DMA); ragged tails in
    either axis are allowed (masked in pass 1, clipped on writeback in pass 2).
    """
    row_bytes = m * itemsize
    if m < 128 or 8 * row_bytes <= _TARGET_TILE_BYTES:
        mt = m  # full spatial extent -> contiguous DMA per block
        if r <= 8:
            rt = r
        else:
            rt = min(max(8, _round_down(_TARGET_TILE_BYTES // max(1, row_bytes), 8)),
                     _round_down(r, 8))
            if rt >= r and r >= 16:
                # Force >= 2 row tiles: keeps both v7x TensorCores busy and
                # gives the DMA pipeline something to overlap with compute.
                rt = max(8, _round_down(_cdiv(r, 2), 8))
    else:
        # Very large spatial extent: tile M in lane-dense multiples of 128.
        rt = r if r < 8 else 8
        mt = min(max(128, _round_down(_TARGET_TILE_BYTES // max(1, rt * itemsize), 128)),
                 _round_down(m, 128))
    return rt, mt


def _stats_kernel(x_ref, sum_ref, sumsq_ref, *, mt, m_total, needs_mask):
    # x_ref: (rt, mt) tile.  Outputs (rt, 1) stay resident in VMEM across the
    # M ("arbitrary", last) grid axis -- accumulator pattern.
    mi = pl.program_id(1)

    @pl.when(mi == 0)
    def _():
        sum_ref[...] = jnp.zeros_like(sum_ref)
        sumsq_ref[...] = jnp.zeros_like(sumsq_ref)

    x = x_ref[...].astype(jnp.float32)
    if needs_mask:
        # Ragged tail along M: zero the out-of-bounds lanes so they cannot
        # contaminate the per-row sums.  (Pass 2 needs no mask: out-of-bounds
        # lanes/rows are simply never written back to HBM.)
        col = jax.lax.broadcasted_iota(jnp.int32, (1, x.shape[-1]), 1) + mi * mt
        x = jnp.where(col < m_total, x, 0.0)
    sum_ref[...] += jnp.sum(x, axis=-1, keepdims=True)
    sumsq_ref[...] += jnp.sum(x * x, axis=-1, keepdims=True)


def _norm_kernel(x_ref, scale_ref, shift_ref, o_ref):
    # y = x * scale + shift; scale/shift are per-row (rt, 1) f32 blocks.
    x = x_ref[...].astype(jnp.float32)
    o_ref[...] = (x * scale_ref[...] + shift_ref[...]).astype(o_ref.dtype)


def _fused_kernel(x_ref, w_ref, b_ref, o_ref):
    # Small-input path: whole (N, C, M) array resident in VMEM.
    x = x_ref[...].astype(jnp.float32)
    n = x.shape[0]
    m = x.shape[2]
    count = jnp.float32(n * m)
    s = jnp.sum(jnp.sum(x, axis=2, keepdims=True), axis=0, keepdims=True)       # (1, C, 1)
    ss = jnp.sum(jnp.sum(x * x, axis=2, keepdims=True), axis=0, keepdims=True)  # (1, C, 1)
    mean = s / count
    var = jnp.maximum(ss / count - mean * mean, 0.0)  # biased variance
    inv_std = jax.lax.rsqrt(var + EPS)
    scale = w_ref[...] * inv_std
    shift = b_ref[...] - mean * scale
    o_ref[...] = (x * scale + shift).astype(o_ref.dtype)


@jax.jit
def batch_norm_2d(x_nchw, weight, bias):
    """Training-mode BatchNorm2d forward (batch statistics, biased variance)."""
    n, c, h, w = x_nchw.shape
    m = h * w
    r = n * c
    itemsize = x_nchw.dtype.itemsize

    # ---- small-input fast path: single fused kernel (x stays VMEM-resident) --
    if r * m * 4 <= _FUSED_MAX_F32_BYTES:
        x3 = x_nchw.reshape(n, c, m)
        w3 = weight.reshape(1, c, 1).astype(jnp.float32)
        b3 = bias.reshape(1, c, 1).astype(jnp.float32)
        y3 = pl.pallas_call(
            _fused_kernel,
            out_shape=jax.ShapeDtypeStruct((n, c, m), x_nchw.dtype),
            compiler_params=pltpu.CompilerParams(
                vmem_limit_bytes=_VMEM_LIMIT_BYTES),
        )(x3, w3, b3)
        return y3.reshape(n, c, h, w)

    # ---- two-pass path -------------------------------------------------------
    x2 = x_nchw.reshape(r, m)  # free, layout-preserving reshape of NCHW
    rt, mt = _pick_tiles(r, m, itemsize)
    r_tiles = _cdiv(r, rt)
    m_tiles = _cdiv(m, mt)
    needs_mask = (m % mt) != 0

    # pass 1: per-row (n*c) partial sum / sum-of-squares
    stats_kernel = functools.partial(_stats_kernel, mt=mt, m_total=m,
                                     needs_mask=needs_mask)
    psum, psumsq = pl.pallas_call(
        stats_kernel,
        out_shape=(jax.ShapeDtypeStruct((r, 1), jnp.float32),
                   jax.ShapeDtypeStruct((r, 1), jnp.float32)),
        grid_spec=pltpu.PrefetchScalarGridSpec(
            num_scalar_prefetch=0,
            grid=(r_tiles, m_tiles),
            in_specs=[pl.BlockSpec((rt, mt), lambda i, j: (i, j))],
            out_specs=(pl.BlockSpec((rt, 1), lambda i, j: (i, 0)),
                       pl.BlockSpec((rt, 1), lambda i, j: (i, 0))),
        ),
        compiler_params=pltpu.CompilerParams(
            dimension_semantics=("parallel", "arbitrary"),
            vmem_limit_bytes=_VMEM_LIMIT_BYTES),
    )(x2)

    # ---- tiny per-channel finalize in plain JAX ------------------------------
    count = jnp.float32(n * m)
    sums = jnp.sum(psum.reshape(n, c), axis=0)     # (C,)
    sumsq = jnp.sum(psumsq.reshape(n, c), axis=0)  # (C,)
    mean = sums / count
    # NOTE: E[x^2] - E[x]^2 in f32 can lose precision for channels with large
    # mean and tiny variance (clamped at 0); a centered second pass would be
    # needed for bitwise parity with PyTorch in that regime.
    var = jnp.maximum(sumsq / count - mean * mean, 0.0)  # biased variance
    inv_std = jax.lax.rsqrt(var + EPS)
    scale_c = weight.astype(jnp.float32) * inv_std
    shift_c = bias.astype(jnp.float32) - mean * scale_c
    scale_r = jnp.broadcast_to(scale_c[None, :], (n, c)).reshape(r, 1)
    shift_r = jnp.broadcast_to(shift_c[None, :], (n, c)).reshape(r, 1)
    # TODO(synk): running_mean/running_var (momentum=0.1, unbiased var) buffer
    # updates are not produced; only the normalized forward output is computed.

    # pass 2: fully parallel y = x * scale + shift
    y2 = pl.pallas_call(
        _norm_kernel,
        out_shape=jax.ShapeDtypeStruct((r, m), x_nchw.dtype),
        grid_spec=pltpu.PrefetchScalarGridSpec(
            num_scalar_prefetch=0,
            grid=(r_tiles, m_tiles),
            in_specs=[pl.BlockSpec((rt, mt), lambda i, j: (i, j)),
                      pl.BlockSpec((rt, 1), lambda i, j: (i, 0)),
                      pl.BlockSpec((rt, 1), lambda i, j: (i, 0))],
            out_specs=pl.BlockSpec((rt, mt), lambda i, j: (i, j)),
        ),
        compiler_params=pltpu.CompilerParams(
            dimension_semantics=("parallel", "parallel"),
            vmem_limit_bytes=_VMEM_LIMIT_BYTES),
    )(x2, scale_r, shift_r)

    return y2.reshape(n, c, h, w)


def _reference(x, weight, bias):
    c = x.shape[1]
    mean = jnp.mean(x, axis=(0, 2, 3), keepdims=True)
    var = jnp.var(x, axis=(0, 2, 3), keepdims=True)
    return (x - mean) / jnp.sqrt(var + EPS) * weight.reshape(1, c, 1, 1) \
        + bias.reshape(1, c, 1, 1)


if __name__ == "__main__":
    key = jax.random.PRNGKey(0)

    # Primary small shape (module-consistent) exercises the fused path; the two
    # larger shapes exercise the tiled two-pass path (ragged row tail / tiled,
    # masked ragged-M tail).
    shapes = [(2, 4, 16, 16),      # fused small-input path
              (6, 64, 56, 56),     # two-pass, full-M tiles, ragged row tile
              (1, 8, 384, 384)]    # two-pass, tiled M with masked ragged tail
    for idx, (N, C, H, W) in enumerate(shapes):
        kx, kw, kb = jax.random.split(jax.random.fold_in(key, idx), 3)
        x = jax.random.normal(kx, (N, C, H, W), dtype=jnp.float32)
        weight = jax.random.normal(kw, (C,), dtype=jnp.float32)
        bias = jax.random.normal(kb, (C,), dtype=jnp.float32)

        y = jax.block_until_ready(batch_norm_2d(x, weight, bias))
        ref = _reference(x, weight, bias)
        assert y.shape == x.shape
        assert jnp.allclose(y, ref, atol=1e-3, rtol=1e-3), \
            f"mismatch vs reference at shape {(N, C, H, W)}"

    print("KERNEL_OK")
</pallas_src>

<mosaic_0001>
module attributes {stable_mosaic.version = 11 : i64} {
  func.func @_fused_kernel(%arg0: memref<2x4x256xf32, #tpu.memory_space<vmem>>, %arg1: memref<1x4x1xf32, #tpu.memory_space<vmem>>, %arg2: memref<1x4x1xf32, #tpu.memory_space<vmem>>, %arg3: memref<2x4x256xf32, #tpu.memory_space<vmem>>) attributes {dimension_semantics = [], scalar_prefetch = 0 : i64, scratch_operands = 0 : i64, tpu.core_type = #tpu.core_type<tc>} {
    %c0 = arith.constant 0 : index
    %c0_0 = arith.constant 0 : index
    %c0_1 = arith.constant 0 : index
    %0 = vector.load %arg0[%c0, %c0_0, %c0_1] : memref<2x4x256xf32, #tpu.memory_space<vmem>>, vector<2x4x256xf32>
    %cst = arith.constant dense<0.000000e+00> : vector<2x4xf32>
    %1 = vector.multi_reduction <add>, %0, %cst [2] : vector<2x4x256xf32> to vector<2x4xf32>
    %2 = vector.shape_cast %1 : vector<2x4xf32> to vector<2x4x1xf32>
    %cst_2 = arith.constant dense<0.000000e+00> : vector<4x1xf32>
    %3 = vector.multi_reduction <add>, %2, %cst_2 [0] : vector<2x4x1xf32> to vector<4x1xf32>
    %4 = vector.shape_cast %3 : vector<4x1xf32> to vector<1x4x1xf32>
    %5 = arith.mulf %0, %0 : vector<2x4x256xf32>
    %cst_3 = arith.constant dense<0.000000e+00> : vector<2x4xf32>
    %6 = vector.multi_reduction <add>, %5, %cst_3 [2] : vector<2x4x256xf32> to vector<2x4xf32>
    %7 = vector.shape_cast %6 : vector<2x4xf32> to vector<2x4x1xf32>
    %cst_4 = arith.constant dense<0.000000e+00> : vector<4x1xf32>
    %8 = vector.multi_reduction <add>, %7, %cst_4 [0] : vector<2x4x1xf32> to vector<4x1xf32>
    %9 = vector.shape_cast %8 : vector<4x1xf32> to vector<1x4x1xf32>
    %cst_5 = arith.constant 5.120000e+02 : f32
    %10 = vector.broadcast %cst_5 : f32 to vector<1x4x1xf32>
    %11 = arith.divf %4, %10 : vector<1x4x1xf32>
    %cst_6 = arith.constant 5.120000e+02 : f32
    %12 = vector.broadcast %cst_6 : f32 to vector<1x4x1xf32>
    %13 = arith.divf %9, %12 : vector<1x4x1xf32>
    %14 = arith.mulf %11, %11 : vector<1x4x1xf32>
    %15 = arith.subf %13, %14 : vector<1x4x1xf32>
    %cst_7 = arith.constant 0.000000e+00 : f32
    %16 = vector.broadcast %cst_7 : f32 to vector<1x4x1xf32>
    %17 = arith.maximumf %15, %16 : vector<1x4x1xf32>
    %cst_8 = arith.constant 9.99999974E-6 : f32
    %18 = vector.broadcast %cst_8 : f32 to vector<1x4x1xf32>
    %19 = arith.addf %17, %18 : vector<1x4x1xf32>
    %20 = math.rsqrt %19 : vector<1x4x1xf32>
    %c0_9 = arith.constant 0 : index
    %c0_10 = arith.constant 0 : index
    %c0_11 = arith.constant 0 : index
    %21 = vector.load %arg1[%c0_9, %c0_10, %c0_11] : memref<1x4x1xf32, #tpu.memory_space<vmem>>, vector<1x4x1xf32>
    %22 = arith.mulf %21, %20 : vector<1x4x1xf32>
    %c0_12 = arith.constant 0 : index
    %c0_13 = arith.constant 0 : index
    %c0_14 = arith.constant 0 : index
    %23 = vector.load %arg2[%c0_12, %c0_13, %c0_14] : memref<1x4x1xf32, #tpu.memory_space<vmem>>, vector<1x4x1xf32>
    %24 = arith.mulf %11, %22 : vector<1x4x1xf32>
    %25 = arith.subf %23, %24 : vector<1x4x1xf32>
    %26 = vector.broadcast %22 : vector<1x4x1xf32> to vector<2x4x256xf32>
    %27 = arith.mulf %0, %26 : vector<2x4x256xf32>
    %28 = vector.broadcast %25 : vector<1x4x1xf32> to vector<2x4x256xf32>
    %29 = arith.addf %27, %28 : vector<2x4x256xf32>
    %c0_15 = arith.constant 0 : index
    %c0_16 = arith.constant 0 : index
    %c0_17 = arith.constant 0 : index
    %30 = vector.load %arg3[%c0_15, %c0_16, %c0_17] : memref<2x4x256xf32, #tpu.memory_space<vmem>>, vector<2x4x256xf32>
    tpu.vector_store %arg3[%c0_15, %c0_16, %c0_17], %29 {strides = array<i32>} : memref<2x4x256xf32, #tpu.memory_space<vmem>>, vector<2x4x256xf32>,
    return
  }
}

</mosaic_0001>

<llo_original>
// kernel: batch_norm_2d.1
$region0: #{batch_norm_2d.1}
  #allocation0 [shape = 'u32[]', space=smem, size = 0x4, offset = 0x4, fixed_abs, tag = 'smem constant byte address 0x4 - core index']
  #allocation1 [shape = 'u32[144,128]{1,0:T(1,128)}', space=vmem, size = 0x12000, scoped, tag = 'internal scratch']
  %s0 = inlined_call_operand.vmem [shape: f32[2,4,256], index: 0, kind: input, shape index: {}]
  %s1 = inlined_call_operand.vmem [shape: f32[1,4,1], index: 1, kind: input, shape index: {}]
  %s2 = inlined_call_operand.vmem [shape: f32[1,4,1], index: 2, kind: input, shape index: {}]
  %s3 = inlined_call_operand.vmem [shape: f32[2,4,256], index: 3, kind: output, shape index: {}]
  %s4 = sld [smem:[#allocation0]]
  $region22: #{batch_norm_2d.1} parent=0
    _
  %s6 = ssub.s32 1, %s4
  %s7 = scalar_select 0, %s6, %s4
  // Predicated region
  $region2: #{batch_norm_2d.1} parent=0 // pred_check
    _
  $region3: #{batch_norm_2d.1} parent=0 // pred_check_branch
    %9 = sbr.rel (0) target = $region5
  $region4: #{batch_norm_2d.1} parent=0 // pred_region
    _
  $region5: #{batch_norm_2d.1} parent=0 // pred_fallthru
    _
  // Predicated region
  $region6: #{batch_norm_2d.1} parent=0 // pred_check
    _
  $region7: #{batch_norm_2d.1} parent=0 // pred_check_branch
    %11 = sbr.rel (0) target = $region9
  $region8: #{batch_norm_2d.1} parent=0 // pred_region
    _
  $region9: #{batch_norm_2d.1} parent=0 // pred_fallthru
    _
  // Predicated region
  $region10: #{batch_norm_2d.1} parent=0 // pred_check
    _
  $region11: #{batch_norm_2d.1} parent=0 // pred_check_branch
    %13 = sbr.rel (0) target = $region13
  $region12: #{batch_norm_2d.1} parent=0 // pred_region
    _
  $region13: #{batch_norm_2d.1} parent=0 // pred_fallthru
    _
  %v14 = vld [vmem:[%s0] sm:$0xff]
  %v15 = vld [vmem:[%s0 + $0x8] sm:$0xff]
  %v18 = vcombine.high %v14, %v14
  %v19 = vcombine.high %v15, %v15
  %vm22 = vcmask 1043456
  %v23 = vsel %vm22, %v14, 0.0
  %v24 = vsel %vm22, %v18, 0.0
  %v25 = vadd.f32 %v23, %v24
  %26 = vadd.xlane.f32.xlu0 %v25
  %v27 = vpop.xlane.xlu0 %26
  %v28 = vsel %vm22, %v15, 0.0
  %v29 = vsel %vm22, %v19, 0.0
  %v30 = vadd.f32 %v28, %v29
  %31 = vadd.xlane.f32.xlu0 %v30
  %v32 = vpop.xlane.xlu0 %31
  %v33 = vsel %vm22, %v27, 0.0
  %v34 = vsel %vm22, %v32, 0.0
  %v35 = vadd.f32 %v33, %v34
  %v36 = vmul.f32 %v14, %v14
  %v37 = vmul.f32 %v15, %v15
  %v40 = vcombine.high %v36, %v36
  %v41 = vcombine.high %v37, %v37
  %v44 = vsel %vm22, %v36, 0.0
  %v45 = vsel %vm22, %v40, 0.0
  %v46 = vadd.f32 %v44, %v45
  %47 = vadd.xlane.f32.xlu0 %v46
  %v48 = vpop.xlane.xlu0 %47
  %v49 = vsel %vm22, %v37, 0.0
  %v50 = vsel %vm22, %v41, 0.0
  %v51 = vadd.f32 %v49, %v50
  %52 = vadd.xlane.f32.xlu0 %v51
  %v53 = vpop.xlane.xlu0 %52
  %v54 = vsel %vm22, %v48, 0.0
  %v55 = vsel %vm22, %v53, 0.0
  %v56 = vadd.f32 %v54, %v55
  %v57 = vrcp.pop 512.0
  %v58 = vmul.f32 %v35, %v57
  %v59 = vmul.f32 %v56, %v57
  %v60 = vmul.f32 %v58, %v58
  %v61 = vsub.f32 %v59, %v60
  %v62 = vmax.f32 %v61, 0.0
  %v63 = vadd.f32 %v62, 1e-05
  %v64 = vrsqrt.pop %v63
  %v65 = vld [vmem:[%s1] sm:$0xf]
  %v66 = vmul.f32 %v65, %v64
  %v67 = vld [vmem:[%s2] sm:$0xf]
  %v68 = vmul.f32 %v58, %v66
  %v69 = vsub.f32 %v67, %v68
  %71 = vset.pattern.permute.xlu0 0
  %72 = vperm.xlu0 %71, %v66
  %v73 = vpop.permute.xlu0 %72
  %v75 = vunpack.c.l.s4 839922192
  %v76 = vunpack.c.0.s8 %v75
  %v77 = vlaneseq
  %v78 = vshrl.u32 %v77, 7
  %v79 = vsub.s32 %v76, %v78
  %v80 = vrot.slane %v73, %v79
  %v82 = vmul.f32 %v14, %v80
  %v83 = vmul.f32 %v15, %v80
  %85 = vset.pattern.permute.xlu0 0
  %86 = vperm.xlu0 %85, %v69
  %v87 = vpop.permute.xlu0 %86
  %v89 = vunpack.c.l.s4 839922192
  %v90 = vunpack.c.0.s8 %v89
  %v91 = vlaneseq
  %v92 = vshrl.u32 %v91, 7
  %v93 = vsub.s32 %v90, %v92
  %v94 = vrot.slane %v87, %v93
  %v96 = vadd.f32 %v82, %v94
  %v97 = vadd.f32 %v83, %v94
  %98 = vst [vmem:[%s3] sm:$0xff] %v96
  %99 = vst [vmem:[%s3 + $0x8] sm:$0xff] %v97
  // Predicated region
  $region14: #{batch_norm_2d.1} parent=0 // pred_check
    _
  $region15: #{batch_norm_2d.1} parent=0 // pred_check_branch
    %101 = sbr.rel (0) target = $region17
  $region16: #{batch_norm_2d.1} parent=0 // pred_region
    _
  $region17: #{batch_norm_2d.1} parent=0 // pred_fallthru
    _
  // Predicated region
  $region18: #{batch_norm_2d.1} parent=0 // pred_check
    _
  $region19: #{batch_norm_2d.1} parent=0 // pred_check_branch
    %103 = sbr.rel (0) target = $region21
  $region20: #{batch_norm_2d.1} parent=0 // pred_region
    _
  $region21: #{batch_norm_2d.1} parent=0 // pred_fallthru
    _

</llo_original>
